<compile_context>
chip_gen: v5e
topology: v5e:2x2
jax: 0.10.0
libtpu: 0.0.40
codegen_flags: <defaults>
</compile_context>

<pallas_src>
import jax
import jax.numpy as jnp
from jax.experimental import pallas as pl
from jax.experimental.pallas import tpu as pltpu


MW_PAD = 128          # lane-dense padding for the (B, 2) module-weight store


def _round_up(x, m):
    return ((x + m - 1) // m) * m


def _vmem_limit_bytes():
    # ~48 MiB on v7x (64 MiB physical), ~96 MiB on v5e/v6e (128 MiB physical).
    try:
        cap = pltpu.get_tpu_info().vmem_capacity_bytes
    except Exception:
        cap = 64 * 1024 * 1024
    return int(max(32 * 1024 * 1024, min(cap * 3 // 4, 96 * 1024 * 1024)))


VMEM_LIMIT = _vmem_limit_bytes()


# ----------------------------------------------------------------------------
# Encoder kernel: batched frame projection + soft cluster pooling (MXU).
# grid = (B // EBB,), "parallel".
# ----------------------------------------------------------------------------
def encoder_kernel(x_ref, wenc_ref, benc_ref, wclu_ref, frame_ref, clus_ref):
    BB, T, D = x_ref.shape
    H = wenc_ref.shape[-1]
    K = wclu_ref.shape[-1]

    # Flatten the batch block so the frame projection has BB*T MXU rows.
    x = x_ref[...].reshape(BB * T, D).astype(jnp.bfloat16)
    frame2 = jnp.tanh(jnp.dot(x, wenc_ref[...], preferred_element_type=jnp.float32)
                      + benc_ref[...])                                # (BB*T, H) f32

    # Soft cluster assignment: softmax over clusters per frame (exact norm).
    logits = jnp.dot(frame2.astype(jnp.bfloat16), wclu_ref[...],
                     preferred_element_type=jnp.float32)              # (BB*T, K)
    logits = logits - jnp.max(logits, axis=-1, keepdims=True)
    a = jnp.exp(logits)
    a = a / jnp.sum(a, axis=-1, keepdims=True)

    frame3 = frame2.reshape(BB, T, H)
    a3 = a.reshape(BB, T, K)
    # cluster_feats[b,k,:] = sum_t a[b,t,k]*frame[b,t,:] / (sum_t a[b,t,k] + eps)
    den = jnp.sum(a3, axis=1, keepdims=True) + 1e-6                   # (BB, 1, K) exact
    a_n = a3 / den                                                    # (BB, T, K)
    clus = jax.lax.dot_general(a_n.astype(jnp.bfloat16), frame3.astype(jnp.bfloat16),
                               dimension_numbers=(((1,), (1,)), ((0,), (0,))),
                               preferred_element_type=jnp.float32)    # (BB, K, H)

    frame_ref[...] = frame3.astype(frame_ref.dtype)
    clus_ref[...] = clus.astype(clus_ref.dtype)


def _encoder_batch_block(B, T):
    # Aim for >= ~256 MXU rows per grid step, while keeping a divisor of B.
    bb = max(1, min(B, pl.cdiv(256, T)))
    while B % bb:
        bb -= 1
    return bb


def run_encoder(cnn_feats, p):
    B, T, D = cnn_feats.shape
    H = p["W_enc"].shape[-1]
    K = p["W_clu"].shape[-1]
    EBB = _encoder_batch_block(B, T)
    return pl.pallas_call(
        encoder_kernel,
        out_shape=(
            jax.ShapeDtypeStruct((B, T, H), jnp.bfloat16),
            jax.ShapeDtypeStruct((B, K, H), jnp.bfloat16),
        ),
        grid=(B // EBB,),
        in_specs=[
            pl.BlockSpec((EBB, T, D), lambda b: (b, 0, 0)),
            pl.BlockSpec((D, H), lambda b: (0, 0)),
            pl.BlockSpec((1, H), lambda b: (0, 0)),
            pl.BlockSpec((H, K), lambda b: (0, 0)),
        ],
        out_specs=(
            pl.BlockSpec((EBB, T, H), lambda b: (b, 0, 0)),
            pl.BlockSpec((EBB, K, H), lambda b: (b, 0, 0)),
        ),
        compiler_params=pltpu.CompilerParams(
            dimension_semantics=("parallel",),
            vmem_limit_bytes=VMEM_LIMIT,
        ),
    )(cnn_feats, p["W_enc"], p["b_enc"], p["W_clu"])


# ----------------------------------------------------------------------------
# Decoder core kernel: GRU + dual attention + module gate, time loop in-kernel.
# grid = (B // BB,), "parallel" over batch blocks (2-way split when B % 16 == 0
# so the two v7x TensorCores each carry half the recurrence).
# Emits per-step hidden states (bf16, for the hoisted vocab projection) and
# lane-dense (padded to 128) module weights.
# ----------------------------------------------------------------------------
def decoder_kernel(frame_ref, clus_ref, gxe_ref, wq_ref, wxc_ref, whh_ref,
                   h_out_ref, mw_out_ref):
    BB, T, H = frame_ref.shape
    L = gxe_ref.shape[0]

    # Hoisted once per batch block: bf16 operands + pre-transposed attention KV
    # (pays the XLU transpose once instead of every time step).
    frame = frame_ref[...]                               # (BB, T, H) bf16
    clus = clus_ref[...]                                 # (BB, K, H) bf16
    frame_t = jnp.swapaxes(frame, 1, 2)                  # (BB, H, T) bf16
    clus_t = jnp.swapaxes(clus, 1, 2)                    # (BB, H, K) bf16
    wq = wq_ref[...]                                     # (H, 2H+MW_PAD) bf16 fused
    wxc = wxc_ref[...]                                   # (H, 3H) bf16 fused
    whh = whh_ref[...]                                   # (H, 3H) bf16 fused
    mw_zeros = jnp.zeros((BB, MW_PAD - 2), jnp.float32)  # hoisted

    def attend(q, kv, kv_t):
        # q: (BB,H) f32; kv: (BB,Tk,H) bf16; kv_t: (BB,H,Tk) bf16.
        q3 = q.astype(jnp.bfloat16)[:, None, :]                          # (BB,1,H)
        s = jnp.einsum('bqh,bhk->bqk', q3, kv_t,
                       preferred_element_type=jnp.float32)               # (BB,1,Tk)
        s = s - jnp.max(s, axis=-1, keepdims=True)
        a = jnp.exp(s)
        a = a * pl.reciprocal(jnp.sum(a, axis=-1, keepdims=True), approx=True)
        ctx = jnp.einsum('bqk,bkh->bqh', a.astype(jnp.bfloat16), kv,
                         preferred_element_type=jnp.float32)             # (BB,1,H)
        return ctx.reshape(BB, H)

    def step(t, h):
        h_bf = h.astype(jnp.bfloat16)

        # Fused query/gate projection: [W_att_frame | W_att_cluster | W_mod(pad)]
        q_all = jnp.dot(h_bf, wq, preferred_element_type=jnp.float32)   # (BB, 2H+128)
        ctx_f = attend(q_all[:, :H], frame, frame_t)                    # (BB, H)
        ctx_c = attend(q_all[:, H:2 * H], clus, clus_t)                 # (BB, H)

        # Module weights (user-visible output) -> exact softmax.
        gl = q_all[:, 2 * H:2 * H + 2]
        gl = gl - jnp.max(gl, axis=-1, keepdims=True)
        g = jnp.exp(gl)
        g = g / jnp.sum(g, axis=-1, keepdims=True)                      # (BB, 2)
        ctx = g[:, 0:1] * ctx_f + g[:, 1:2] * ctx_c                     # (BB, H) f32

        # GRU cell: token part precomputed outside the loop (gxe_ref holds
        # emb_t @ W_xe + b_g for all gates); ctx/h parts use wide 3H slabs.
        gx = gxe_ref[t] + jnp.dot(ctx.astype(jnp.bfloat16), wxc,
                                  preferred_element_type=jnp.float32)   # (BB, 3H)
        gh = jnp.dot(h_bf, whh, preferred_element_type=jnp.float32)     # (BB, 3H)
        r = jax.nn.sigmoid(gx[:, :H] + gh[:, :H])
        z = jax.nn.sigmoid(gx[:, H:2 * H] + gh[:, H:2 * H])
        n = jnp.tanh(gx[:, 2 * H:] + r * gh[:, 2 * H:])
        h_new = (1.0 - z) * n + z * h

        h_out_ref[t] = h_new.astype(h_out_ref.dtype)
        # lane-dense store: pad (BB, 2) module weights to (BB, 128)
        mw_out_ref[t] = jnp.concatenate([g, mw_zeros], axis=-1)
        return h_new

    jax.lax.fori_loop(0, L, step, jnp.zeros((BB, H), jnp.float32), unroll=2)


def run_decoder_core(frame_feats, cluster_feats, gx_e, p):
    # frame_feats (B,T,H) bf16, cluster_feats (B,K,H) bf16, gx_e (L,B,3H) f32.
    B, T, H = frame_feats.shape
    K = cluster_feats.shape[1]
    L = gx_e.shape[0]
    # 2-way TensorCore split on v7x when the (8,·) sublane tiling allows it;
    # otherwise a single batch block (still correct/efficient on v5e/v6e).
    BB = B // 2 if B % 16 == 0 else B
    QW = p["W_q"].shape[-1]
    # TODO(synk): with a single grid step, pipeline_mode=pl.Buffered(1) on the
    # large operands would halve decoder VMEM residency; left at the default
    # double-buffering for robustness.
    return pl.pallas_call(
        decoder_kernel,
        out_shape=(
            jax.ShapeDtypeStruct((L, B, H), jnp.bfloat16),      # hidden states
            jax.ShapeDtypeStruct((L, B, MW_PAD), jnp.float32),  # padded module weights
        ),
        grid=(B // BB,),
        in_specs=[
            pl.BlockSpec((BB, T, H), lambda b: (b, 0, 0)),      # frame_feats
            pl.BlockSpec((BB, K, H), lambda b: (b, 0, 0)),      # cluster_feats
            pl.BlockSpec((L, BB, 3 * H), lambda b: (0, b, 0)),  # hoisted emb projections
            pl.BlockSpec((H, QW), lambda b: (0, 0)),            # fused [W_af|W_ac|W_mod]
            pl.BlockSpec((H, 3 * H), lambda b: (0, 0)),         # fused W_xc
            pl.BlockSpec((H, 3 * H), lambda b: (0, 0)),         # fused W_hh
        ],
        out_specs=(
            pl.BlockSpec((L, BB, H), lambda b: (0, b, 0)),
            pl.BlockSpec((L, BB, MW_PAD), lambda b: (0, b, 0)),
        ),
        compiler_params=pltpu.CompilerParams(
            dimension_semantics=("parallel",),
            vmem_limit_bytes=VMEM_LIMIT,
        ),
    )(frame_feats, cluster_feats, gx_e, p["W_q"], p["W_xc_f"], p["W_hh_f"])


# ----------------------------------------------------------------------------
# Generic tiled matmul + bias kernel: (R,K)@(K,N)+b, bf16 MXU / f32 accumulate.
# Non-divisible R/N handled by padding (never falls back to an (K,N) block).
# ----------------------------------------------------------------------------
def _matmul_bias_kernel(x_ref, w_ref, b_ref, o_ref):
    o_ref[...] = (jnp.dot(x_ref[...], w_ref[...],
                          preferred_element_type=jnp.float32)
                  + b_ref[...]).astype(o_ref.dtype)


def run_matmul_bias(x, w, b, *, out_dtype=jnp.float32, tm=512, tn=1024):
    R, Kd = x.shape
    N = w.shape[-1]
    x = x.astype(jnp.bfloat16)
    w = w.astype(jnp.bfloat16)

    tm_ = min(tm, _round_up(R, 8))       # multiple of 8 sublanes
    tn_ = min(tn, _round_up(N, 128))     # multiple of 128 lanes (lane-dense stores)
    Rp = _round_up(R, tm_)
    Np = _round_up(N, tn_)
    if Rp != R:
        x = jnp.pad(x, ((0, Rp - R), (0, 0)))
    if Np != N:
        w = jnp.pad(w, ((0, 0), (0, Np - N)))
        b = jnp.pad(b, ((0, 0), (0, Np - N)))

    out = pl.pallas_call(
        _matmul_bias_kernel,
        out_shape=jax.ShapeDtypeStruct((Rp, Np), out_dtype),
        grid=(Rp // tm_, Np // tn_),
        in_specs=[
            pl.BlockSpec((tm_, Kd), lambda i, j: (i, 0)),
            pl.BlockSpec((Kd, tn_), lambda i, j: (0, j)),
            pl.BlockSpec((1, tn_), lambda i, j: (0, j)),
        ],
        out_specs=pl.BlockSpec((tm_, tn_), lambda i, j: (i, j)),
        compiler_params=pltpu.CompilerParams(
            dimension_semantics=("parallel", "parallel"),
            vmem_limit_bytes=VMEM_LIMIT,
        ),
    )(x, w, b)
    if Rp != R or Np != N:
        out = out[:R, :N]
    return out


# ----------------------------------------------------------------------------
# Wrapper-side weight preparation: bf16 pre-cast + gate/attention slab fusion.
# ----------------------------------------------------------------------------
def prepare_params(params):
    w_mod = params["W_mod"]
    w_mod_pad = jnp.pad(w_mod, ((0, 0), (0, MW_PAD - w_mod.shape[-1])))
    return {
        "W_enc": params["W_enc"].astype(jnp.bfloat16),
        "b_enc": params["b_enc"],
        "W_clu": params["W_clu"].astype(jnp.bfloat16),
        "embed": params["embed"].astype(jnp.bfloat16),
        # fused query/gate projection: [W_att_frame | W_att_cluster | W_mod(pad 128)]
        "W_q": jnp.concatenate([params["W_af"], params["W_ac"], w_mod_pad],
                               axis=-1).astype(jnp.bfloat16),
        # fused per-gate slabs (gate order r|z|n preserved)
        "W_xe_f": jnp.concatenate([params["W_xe"][0], params["W_xe"][1],
                                   params["W_xe"][2]], axis=-1).astype(jnp.bfloat16),
        "b_g_f": jnp.concatenate([params["b_g"][0], params["b_g"][1],
                                  params["b_g"][2]], axis=-1),
        "W_xc_f": jnp.concatenate([params["W_xc"][0], params["W_xc"][1],
                                   params["W_xc"][2]], axis=-1).astype(jnp.bfloat16),
        "W_hh_f": jnp.concatenate([params["W_hh"][0], params["W_hh"][1],
                                   params["W_hh"][2]], axis=-1).astype(jnp.bfloat16),
        "W_out": params["W_out"].astype(jnp.bfloat16),
        "b_out": params["b_out"],
    }


# ----------------------------------------------------------------------------
# CapModel forward (glue)
# ----------------------------------------------------------------------------
def cap_model_forward(params, cnn_feats, captions, teacher_forcing_ratio=1.0):
    # TODO(synk): only the teacher_forcing_ratio == 1.0 path is implemented; the
    # sampled-token path requires a data-dependent embedding gather inside the
    # recurrent kernel.
    p = prepare_params(params)
    B, L = captions.shape
    H = params["W_af"].shape[0]
    V = params["W_out"].shape[-1]

    frame_feats, cluster_feats = run_encoder(cnn_feats, p)        # bf16 activations

    # Token-embedding lookup (gather) stays in plain-JAX glue; the embedding-
    # dependent GRU input projections are hoisted out of the recurrence as one
    # (L*B, E) @ (E, 3H) MXU matmul (bias folded in).
    emb = jnp.take(p["embed"], captions, axis=0)                  # (B, L, E) bf16
    emb_seq = jnp.transpose(emb, (1, 0, 2))                       # (L, B, E) time-major
    E = emb_seq.shape[-1]
    gx_e = run_matmul_bias(emb_seq.reshape(L * B, E), p["W_xe_f"], p["b_g_f"],
                           tm=512, tn=4096).reshape(L, B, 3 * H)  # (L, B, 3H) f32

    h_seq, mw_pad = run_decoder_core(frame_feats, cluster_feats, gx_e, p)

    # Vocab projection hoisted out of the recurrent loop: rows ordered as
    # (b, l) so logits come out directly in (B, L, V) layout (no HBM transpose
    # of the largest tensor; only the tiny (L,B,H) hidden tensor is reordered).
    h_bl = jnp.swapaxes(h_seq, 0, 1).reshape(B * L, H)            # bf16
    logits = run_matmul_bias(h_bl, p["W_out"], p["b_out"], tm=1024, tn=2048)
    outputs = logits.reshape(B, L, V)                             # (B, L, V) f32
    module_weights = jnp.transpose(mw_pad[:, :, :2], (1, 0, 2))   # (B, L, 2)
    return outputs, module_weights


def init_params(key, D, H, K, E, V):
    ks = jax.random.split(key, 12)
    s = 0.1
    return {
        "W_enc": s * jax.random.normal(ks[0], (D, H), jnp.float32),
        "b_enc": jnp.zeros((1, H), jnp.float32),
        "W_clu": s * jax.random.normal(ks[1], (H, K), jnp.float32),
        "embed": s * jax.random.normal(ks[2], (V, E), jnp.float32),
        "W_af": s * jax.random.normal(ks[3], (H, H), jnp.float32),
        "W_ac": s * jax.random.normal(ks[4], (H, H), jnp.float32),
        "W_mod": s * jax.random.normal(ks[5], (H, 2), jnp.float32),
        "W_xe": s * jax.random.normal(ks[6], (3, E, H), jnp.float32),
        "W_xc": s * jax.random.normal(ks[7], (3, H, H), jnp.float32),
        "W_hh": s * jax.random.normal(ks[8], (3, H, H), jnp.float32),
        "b_g": jnp.zeros((3, 1, H), jnp.float32),
        "W_out": s * jax.random.normal(ks[9], (H, V), jnp.float32),
        "b_out": jnp.zeros((1, V), jnp.float32),
    }


if __name__ == "__main__":
    B, T, D = 2, 8, 32          # batch, num frames, cnn feature dim
    H, K = 32, 4                # hidden size, num clusters
    L, E, V = 8, 32, 64         # caption length, embed dim, vocab size

    key = jax.random.PRNGKey(0)
    k_x, k_c, k_p = jax.random.split(key, 3)
    cnn_feats = jax.random.normal(k_x, (B, T, D), jnp.float32)
    captions = jax.random.randint(k_c, (B, L), 0, V)
    params = init_params(k_p, D, H, K, E, V)

    outputs, module_weights = cap_model_forward(params, cnn_feats, captions,
                                                teacher_forcing_ratio=1.0)
    jax.block_until_ready((outputs, module_weights))

    assert outputs.shape == (B, L, V)
    assert module_weights.shape == (B, L, 2)
    assert bool(jnp.all(jnp.isfinite(outputs)))
    assert bool(jnp.all(jnp.isfinite(module_weights)))
    print("KERNEL_OK")
</pallas_src>

<mosaic_0001>
module attributes {stable_mosaic.version = 11 : i64} {
  func.func @encoder_kernel(%arg0: i32, %arg1: memref<2x8x32xf32, #tpu.memory_space<vmem>>, %arg2: memref<32x32xbf16, #tpu.memory_space<vmem>>, %arg3: memref<1x32xf32, #tpu.memory_space<vmem>>, %arg4: memref<32x4xbf16, #tpu.memory_space<vmem>>, %arg5: memref<2x8x32xbf16, #tpu.memory_space<vmem>>, %arg6: memref<2x4x32xbf16, #tpu.memory_space<vmem>>) attributes {dimension_semantics = [#tpu.dimension_semantics<parallel>], iteration_bounds = array<i64: 1>, scalar_prefetch = 0 : i64, scratch_operands = 0 : i64, tpu.core_type = #tpu.core_type<tc>, window_params = [{transform_indices = @transform_0, window_bounds = array<i64: 2, 8, 32>}, {pipeline_mode = #tpu.pipeline_mode<synchronous>, transform_indices = @transform_1, window_bounds = array<i64: 32, 32>}, {pipeline_mode = #tpu.pipeline_mode<synchronous>, transform_indices = @transform_2, window_bounds = array<i64: 1, 32>}, {pipeline_mode = #tpu.pipeline_mode<synchronous>, transform_indices = @transform_3, window_bounds = array<i64: 32, 4>}, {transform_indices = @transform_4, window_bounds = array<i64: 2, 8, 32>}, {transform_indices = @transform_5, window_bounds = array<i64: 2, 4, 32>}]} {
    %c0 = arith.constant 0 : index
    %c0_0 = arith.constant 0 : index
    %c0_1 = arith.constant 0 : index
    %0 = vector.load %arg1[%c0, %c0_0, %c0_1] : memref<2x8x32xf32, #tpu.memory_space<vmem>>, vector<2x8x32xf32>
    %1 = vector.shape_cast %0 : vector<2x8x32xf32> to vector<16x32xf32>
    %2 = arith.truncf %1 : vector<16x32xf32> to vector<16x32xbf16>
    %c0_2 = arith.constant 0 : index
    %c0_3 = arith.constant 0 : index
    %3 = vector.load %arg2[%c0_2, %c0_3] : memref<32x32xbf16, #tpu.memory_space<vmem>>, vector<32x32xbf16>
    %cst = arith.constant dense<0.000000e+00> : vector<16x32xf32>
    %4 = tpu.matmul %2, %3, %cst {dimension_numbers = #tpu.dot_dimension_numbers<[1], [0], [0], [1], [0, 0, 1, 1], [], []>} : vector<16x32xbf16>, vector<32x32xbf16>, vector<16x32xf32> -> vector<16x32xf32>
    %c0_4 = arith.constant 0 : index
    %c0_5 = arith.constant 0 : index
    %5 = vector.load %arg3[%c0_4, %c0_5] : memref<1x32xf32, #tpu.memory_space<vmem>>, vector<1x32xf32>
    %6 = vector.broadcast %5 : vector<1x32xf32> to vector<16x32xf32>
    %7 = arith.addf %4, %6 : vector<16x32xf32>
    %8 = math.tanh %7 : vector<16x32xf32>
    %9 = arith.truncf %8 : vector<16x32xf32> to vector<16x32xbf16>
    %c0_6 = arith.constant 0 : index
    %c0_7 = arith.constant 0 : index
    %10 = vector.load %arg4[%c0_6, %c0_7] : memref<32x4xbf16, #tpu.memory_space<vmem>>, vector<32x4xbf16>
    %cst_8 = arith.constant dense<0.000000e+00> : vector<16x4xf32>
    %11 = tpu.matmul %9, %10, %cst_8 {dimension_numbers = #tpu.dot_dimension_numbers<[1], [0], [0], [1], [0, 0, 1, 1], [], []>} : vector<16x32xbf16>, vector<32x4xbf16>, vector<16x4xf32> -> vector<16x4xf32>
    %cst_9 = arith.constant dense<0xFF800000> : vector<16xf32>
    %12 = vector.multi_reduction <maximumf>, %11, %cst_9 [1] : vector<16x4xf32> to vector<16xf32>
    %13 = vector.shape_cast %12 : vector<16xf32> to vector<16x1xf32>
    %14 = vector.broadcast %13 : vector<16x1xf32> to vector<16x4xf32>
    %15 = arith.subf %11, %14 : vector<16x4xf32>
    %16 = math.exp %15 : vector<16x4xf32>
    %cst_10 = arith.constant dense<0.000000e+00> : vector<16xf32>
    %17 = vector.multi_reduction <add>, %16, %cst_10 [1] : vector<16x4xf32> to vector<16xf32>
    %18 = vector.shape_cast %17 : vector<16xf32> to vector<16x1xf32>
    %19 = vector.broadcast %18 : vector<16x1xf32> to vector<16x4xf32>
    %20 = arith.divf %16, %19 : vector<16x4xf32>
    %21 = vector.shape_cast %8 : vector<16x32xf32> to vector<2x8x32xf32>
    %22 = vector.shape_cast %20 : vector<16x4xf32> to vector<2x8x4xf32>
    %cst_11 = arith.constant dense<0.000000e+00> : vector<2x4xf32>
    %23 = vector.multi_reduction <add>, %22, %cst_11 [1] : vector<2x8x4xf32> to vector<2x4xf32>
    %24 = vector.shape_cast %23 : vector<2x4xf32> to vector<2x1x4xf32>
    %cst_12 = arith.constant 9.99999997E-7 : f32
    %25 = vector.broadcast %cst_12 : f32 to vector<2x1x4xf32>
    %26 = arith.addf %24, %25 : vector<2x1x4xf32>
    %27 = vector.broadcast %26 : vector<2x1x4xf32> to vector<2x8x4xf32>
    %28 = arith.divf %22, %27 : vector<2x8x4xf32>
    %29 = arith.truncf %28 : vector<2x8x4xf32> to vector<2x8x4xbf16>
    %30 = arith.truncf %21 : vector<2x8x32xf32> to vector<2x8x32xbf16>
    %cst_13 = arith.constant dense<0.000000e+00> : vector<2x4x32xf32>
    %31 = tpu.matmul %29, %30, %cst_13 {dimension_numbers = #tpu.dot_dimension_numbers<[1], [1], [2], [2], [0, 0, 0, 2, 1, 2], [0], [0]>} : vector<2x8x4xbf16>, vector<2x8x32xbf16>, vector<2x4x32xf32> -> vector<2x4x32xf32>
    %32 = arith.truncf %21 : vector<2x8x32xf32> to vector<2x8x32xbf16>
    %c0_14 = arith.constant 0 : index
    %c0_15 = arith.constant 0 : index
    %c0_16 = arith.constant 0 : index
    %33 = vector.load %arg5[%c0_14, %c0_15, %c0_16] : memref<2x8x32xbf16, #tpu.memory_space<vmem>>, vector<2x8x32xbf16>
    tpu.vector_store %arg5[%c0_14, %c0_15, %c0_16], %32 {strides = array<i32>} : memref<2x8x32xbf16, #tpu.memory_space<vmem>>, vector<2x8x32xbf16>,
    %34 = arith.truncf %31 : vector<2x4x32xf32> to vector<2x4x32xbf16>
    %c0_17 = arith.constant 0 : index
    %c0_18 = arith.constant 0 : index
    %c0_19 = arith.constant 0 : index
    %35 = vector.load %arg6[%c0_17, %c0_18, %c0_19] : memref<2x4x32xbf16, #tpu.memory_space<vmem>>, vector<2x4x32xbf16>
    tpu.vector_store %arg6[%c0_17, %c0_18, %c0_19], %34 {strides = array<i32>} : memref<2x4x32xbf16, #tpu.memory_space<vmem>>, vector<2x4x32xbf16>,
    return
  }
  func.func @transform_0(%arg0: i32) -> (i32, i32, i32) {
    %c0_i32 = arith.constant 0 : i32
    %c0_i32_0 = arith.constant 0 : i32
    %c0_i32_1 = arith.constant 0 : i32
    return %arg0, %c0_i32, %c0_i32_0 : i32, i32, i32
  }
  func.func @transform_1(%arg0: i32) -> (i32, i32) {
    %c0_i32 = arith.constant 0 : i32
    %c0_i32_0 = arith.constant 0 : i32
    %c0_i32_1 = arith.constant 0 : i32
    return %c0_i32, %c0_i32_0 : i32, i32
  }
  func.func @transform_2(%arg0: i32) -> (i32, i32) {
    %c0_i32 = arith.constant 0 : i32
    %c0_i32_0 = arith.constant 0 : i32
    %c0_i32_1 = arith.constant 0 : i32
    return %c0_i32, %c0_i32_0 : i32, i32
  }
  func.func @transform_3(%arg0: i32) -> (i32, i32) {
    %c0_i32 = arith.constant 0 : i32
    %c0_i32_0 = arith.constant 0 : i32
    %c0_i32_1 = arith.constant 0 : i32
    return %c0_i32, %c0_i32_0 : i32, i32
  }
  func.func @transform_4(%arg0: i32) -> (i32, i32, i32) {
    %c0_i32 = arith.constant 0 : i32
    %c0_i32_0 = arith.constant 0 : i32
    %c0_i32_1 = arith.constant 0 : i32
    return %arg0, %c0_i32, %c0_i32_0 : i32, i32, i32
  }
  func.func @transform_5(%arg0: i32) -> (i32, i32, i32) {
    %c0_i32 = arith.constant 0 : i32
    %c0_i32_0 = arith.constant 0 : i32
    %c0_i32_1 = arith.constant 0 : i32
    return %arg0, %c0_i32, %c0_i32_0 : i32, i32, i32
  }
}

</mosaic_0001>

<llo_original>
// kernel: tpu_custom_call.1
$region0: #{tpu_custom_call.1}
  #allocation0 [shape = 'u32[]', space=smem, size = 0x4, offset = 0x4, fixed_abs, tag = 'smem constant byte address 0x4 - core index']
  #allocation1 [shape = 'u32[72,128]{1,0:T(1,128)}', space=vmem, size = 0x9000, scoped, tag = 'internal scratch']
  %s0 = inlined_call_operand.vmem [shape: f32[2,8,32], index: 0, kind: input, shape index: {}]
  %s1 = inlined_call_operand.hbm [shape: bf16[32,32], index: 1, kind: input, shape index: {}]
  %s2 = inlined_call_operand.vmem [shape: f32[1,32], index: 2, kind: input, shape index: {}]
  %s3 = inlined_call_operand.vmem [shape: bf16[32,4], index: 3, kind: input, shape index: {}]
  %s4 = inlined_call_operand.hbm [shape: bf16[2,8,32], index: 4, kind: output, shape index: {0}]
  %s5 = inlined_call_operand.hbm [shape: bf16[2,4,32], index: 5, kind: output, shape index: {1}]
  %6 = xla_tuple %s4, %s5
  %s7 = sld [smem:[#allocation0]]
  $region38: #{tpu_custom_call.1} parent=0
    _
  %s9 = ssub.s32 1, %s7
  %s10 = scalar_select 0, %s9, %s7
  $region1: #{tpu_custom_call.1} parent=0
    #allocation2 [shape = 'u8[8192]{0}', space=vmem, size = 0x2000, scoped, tag = 'input window, operand 1, single buffered']
    #allocation3 [shape = 's32[1]{0}', space=sflag, size = 0x4, scoped, tag = 'scoped memory for tpu_custom_call.1']
    #allocation4 [shape = 's32[1]{0}', space=sflag, size = 0x4, scoped, tag = 'scoped memory for tpu_custom_call.1']
    #allocation5 [shape = 'u8[4096]{0}', space=vmem, size = 0x1000, scoped, tag = 'output window, operand 0, single buffered']
    #allocation6 [shape = 'u8[2048]{0}', space=vmem, size = 0x800, scoped, tag = 'output window, operand 1, single buffered']
    #allocation7 [shape = 's32[1]{0}', space=sflag, size = 0x4, scoped, tag = 'scoped memory for tpu_custom_call.1']
    %11 = vsyncpa [#allocation3], 0
    %12 = vsyncpa [#allocation4], 0
    %13 = vsyncpa [#allocation7], 0
    // Predicated region
    $region2: #{tpu_custom_call.1} parent=1 // pred_check
      _
    $region3: #{tpu_custom_call.1} parent=1 // pred_check_branch
      %15 = sbr.rel (0) target = $region5
    $region4: #{tpu_custom_call.1} parent=1 // pred_region
      _
    $region5: #{tpu_custom_call.1} parent=1 // pred_fallthru
      _
    // Predicated region
    $region6: #{tpu_custom_call.1} parent=1 // pred_check
      _
    $region7: #{tpu_custom_call.1} parent=1 // pred_check_branch
      %17 = sbr.rel (0) target = $region9
    $region8: #{tpu_custom_call.1} parent=1 // pred_region
      %19 = vsyncadd [#allocation3], 0
      %s20 = sshll.u32 %s1, 4
      %s21 = int_to_ptr.hbm [resolvable:$true] %s20
      %s22 = sshll.u32 [#allocation2], 4
      %s23 = int_to_ptr.vmem [resolvable:$true] %s22
      %28 = dma.hbm_to_vmem [thread:$0]  %s21, 256, %s23, [#allocation3], 64, 64, 4
    $region9: #{tpu_custom_call.1} parent=1 // pred_fallthru
      _
    // Predicated region
    $region10: #{tpu_custom_call.1} parent=1 // pred_check
      _
    $region11: #{tpu_custom_call.1} parent=1 // pred_check_branch
      %30 = sbr.rel (0) target = $region13
    $region12: #{tpu_custom_call.1} parent=1 // pred_region
      _
    $region13: #{tpu_custom_call.1} parent=1 // pred_fallthru
      _
    // Predicated region
    $region14: #{tpu_custom_call.1} parent=1 // pred_check
      _
    $region15: #{tpu_custom_call.1} parent=1 // pred_check_branch
      %32 = sbr.rel (0) target = $region17
    $region16: #{tpu_custom_call.1} parent=1 // pred_region
      _
    $region17: #{tpu_custom_call.1} parent=1 // pred_fallthru
      _
    // Predicated region
    $region18: #{tpu_custom_call.1} parent=1 // pred_check
      _
    $region19: #{tpu_custom_call.1} parent=1 // pred_check_branch
      %34 = sbr.rel (0) target = $region21
    $region20: #{tpu_custom_call.1} parent=1 // pred_region
      %36 = dma.done [#allocation3], 256
    $region21: #{tpu_custom_call.1} parent=1 // pred_fallthru
      _
    %v38 = vld [vmem:[%s0] sm:$0xff]
    %v39 = vld [vmem:[%s0 + $0x8] sm:$0xff]
    %v40 = vpack.c.bf16 %v39, %v38
    %v41 = vld [vmem:[#allocation2] sm:$0xf]
    %v42 = vld [vmem:[#allocation2 + $0x4] sm:$0xf]
    %v43 = vld [vmem:[#allocation2 + $0x8] sm:$0xf]
    %v44 = vld [vmem:[#allocation2 + $0xc] sm:$0xf]
    %v45 = vld [vmem:[%s2] sm:$0x1]
    %v47 = vperm.slane %v45, 0
    %v53 = vunpack.c.l.b16 %v41
    %v54 = vunpack.c.l.b16 %v42
    %v55 = vunpack.c.l.b16 %v43
    %v56 = vunpack.c.l.b16 %v44
    %v57 = vpack.c.b16 %v54, %v53
    %v58 = vpack.c.b16 %v56, %v55
    %vm61 = vcmask 261120
    %v63 = vsel %vm61, %v40, 0
    %65 = vmatpush.bf16.msra.mxu0 0
    %66 = vmatpush.bf16.msra.mxu0 0
    %67 = vmatpush.bf16.msra.mxu0 0
    %68 = vmatpush.bf16.msra.mxu0 0
    %69 = vmatpush.bf16.msra.mxu0 0
    %70 = vmatpush.bf16.msra.mxu0 0
    %71 = vmatpush.bf16.msra.mxu0 %v58
    %72 = vmatpush.bf16.msra.mxu0 %v57
    %73 = vmatmul.bf16.gmra.mxu0 %v63
    %v74 = vpop.f32.mrf.mxu0
    %v75 = vadd.f32 %v47, %v74
    %v76 = vpop.f32.mrf.mxu0
    %v77 = vadd.f32 %v47, %v76
    %78 = vdwg.mxu0
    %v79 = vtanh.pop %v75
    %v80 = vtanh.pop %v77
    %v81 = vpack.c.bf16 %v80, %v79
    %v82 = vld [vmem:[%s3] sm:$0xf]
    %v83 = vld [vmem:[%s3 + $0x4] sm:$0xf]
    %v84 = vld [vmem:[%s3 + $0x8] sm:$0xf]
    %v85 = vld [vmem:[%s3 + $0xc] sm:$0xf]
    %v90 = vunpack.c.l.b16 %v82
    %v91 = vunpack.c.l.b16 %v83
    %v92 = vunpack.c.l.b16 %v84
    %v93 = vunpack.c.l.b16 %v85
    %v94 = vpack.c.b16 %v91, %v90
    %v95 = vpack.c.b16 %v93, %v92
    %v99 = vsel %vm61, %v81, 0
    %101 = vmatpush.bf16.msra.mxu0 0
    %102 = vmatpush.bf16.msra.mxu0 0
    %103 = vmatpush.bf16.msra.mxu0 0
    %104 = vmatpush.bf16.msra.mxu0 0
    %105 = vmatpush.bf16.msra.mxu0 0
    %106 = vmatpush.bf16.msra.mxu0 0
    %107 = vmatpush.bf16.msra.mxu0 %v95
    %108 = vmatpush.bf16.msra.mxu0 %v94
    %109 = vmatmul.bf16.gmra.mxu0 %v99
    %v110 = vpop.f32.mrf.mxu0
    %v111 = vadd.f32 0.0, %v110
    %v112 = vpop.f32.mrf.mxu0
    %v113 = vadd.f32 0.0, %v112
    %114 = vdwg.mxu0
    %vm115 = vcmask 31744
    %v116 = vsel %vm115, %v111, -inf
    %117 = vmax.xlane.f32.xlu0 %v116
    %v118 = vpop.xlane.xlu0 %117
    %v119 = vsel %vm115, %v113, -inf
    %120 = vmax.xlane.f32.xlu0 %v119
    %v121 = vpop.xlane.xlu0 %120
    %v122 = vsub.f32 %v111, %v118
    %v123 = vsub.f32 %v113, %v121
    %v124 = vmul.f32 %v122, 1.442695
    %v125 = vpow.pop %v124
    %v126 = vmul.f32 %v123, 1.442695
    %v127 = vpow.pop %v126
    %v128 = vsel %vm115, %v125, 0.0
    %129 = vadd.xlane.f32.xlu0 %v128
    %v130 = vpop.xlane.xlu0 %129
    %v131 = vsel %vm115, %v127, 0.0
    %132 = vadd.xlane.f32.xlu0 %v131
    %v133 = vpop.xlane.xlu0 %132
    %v134 = vrcp.pop %v130
    %v135 = vmul.f32 %v130, %v134
    %v136 = vsub.f32 1.0, %v135
    %v137 = vmul.f32 %v134, %v136
    %v138 = vadd.f32 %v134, %v137
    %vm139 = vweird.f32 %v130
    %vm140 = vweird.f32 %v134
    %vm141 = vmor %vm139, %vm140
    %v142 = vsel %vm141, %v134, %v138
    %v143 = vand.u32 2147483647, %v130
    %vm144 = vcmp.eq.f32.partialorder %v143, 8.507059e+37
    %v145 = vand.u32 %v130, 2147483648
    %v146 = vor.u32 1.1754944e-38, %v145
    %v147 = vsel %vm144, %v146, %v142
    %v148 = vmul.f32 %v125, %v147
    %v149 = vrcp.pop %v133
    %v150 = vmul.f32 %v133, %v149
    %v151 = vsub.f32 1.0, %v150
    %v152 = vmul.f32 %v149, %v151
    %v153 = vadd.f32 %v149, %v152
    %vm154 = vweird.f32 %v133
    %vm155 = vweird.f32 %v149
    %vm156 = vmor %vm154, %vm155
    %v157 = vsel %vm156, %v149, %v153
    %v158 = vand.u32 2147483647, %v133
    %vm159 = vcmp.eq.f32.partialorder %v158, 8.507059e+37
    %v160 = vand.u32 %v133, 2147483648
    %v161 = vor.u32 1.1754944e-38, %v160
    %v162 = vsel %vm159, %v161, %v157
    %v163 = vmul.f32 %v127, %v162
    %v164 = vsel %vm115, %v148, 0.0
    %v165 = vrot.slane %v164, 4
    %v166 = vadd.f32 %v164, %v165
    %v167 = vrot.slane %v166, 2
    %v168 = vadd.f32 %v166, %v167
    %v169 = vrot.slane %v168, 1
    %v170 = vadd.f32 %v168, %v169
    %v171 = vsel %vm115, %v163, 0.0
    %v172 = vrot.slane %v171, 4
    %v173 = vadd.f32 %v171, %v172
    %v174 = vrot.slane %v173, 2
    %v175 = vadd.f32 %v173, %v174
    %v176 = vrot.slane %v175, 1
    %v177 = vadd.f32 %v175, %v176
    %v178 = vadd.f32 %v170, 1e-06
    %v179 = vadd.f32 %v177, 1e-06
    %v180 = vrcp.pop %v178
    %v181 = vmul.f32 %v178, %v180
    %v182 = vsub.f32 1.0, %v181
    %v183 = vmul.f32 %v180, %v182
    %v184 = vadd.f32 %v180, %v183
    %vm185 = vweird.f32 %v178
    %vm186 = vweird.f32 %v180
    %vm187 = vmor %vm185, %vm186
    %v188 = vsel %vm187, %v180, %v184
    %v189 = vand.u32 2147483647, %v178
    %vm190 = vcmp.eq.f32.partialorder %v189, 8.507059e+37
    %v191 = vand.u32 %v178, 2147483648
    %v192 = vor.u32 1.1754944e-38, %v191
    %v193 = vsel %vm190, %v192, %v188
    %v194 = vmul.f32 %v148, %v193
    %v195 = vrcp.pop %v179
    %v196 = vmul.f32 %v179, %v195
    %v197 = vsub.f32 1.0, %v196
    %v198 = vmul.f32 %v195, %v197
    %v199 = vadd.f32 %v195, %v198
    %vm200 = vweird.f32 %v179
    %vm201 = vweird.f32 %v195
    %vm202 = vmor %vm200, %vm201
    %v203 = vsel %vm202, %v195, %v199
    %v204 = vand.u32 2147483647, %v179
    %vm205 = vcmp.eq.f32.partialorder %v204, 8.507059e+37
    %v206 = vand.u32 %v179, 2147483648
    %v207 = vor.u32 1.1754944e-38, %v206
    %v208 = vsel %vm205, %v207, %v203
    %v209 = vmul.f32 %v163, %v208
    %v210 = vpack.c.bf16 %v194, %v194
    %v211 = vpack.c.bf16 %v209, %v209
    %v212 = vpack.c.bf16 %v79, %v79
    %v213 = vpack.c.bf16 %v80, %v80
    %214 = vxpose.xlu0.c.b16.start [1/8] %v210, 128
    %215 = vxpose.xlu0.c.b16.cont [2/8] 0, 128
    %216 = vxpose.xlu0.c.b16.cont [3/8] 0, 128
    %217 = vxpose.xlu0.c.b16.cont [4/8] 0, 128
    %218 = vxpose.xlu0.c.b16.cont [5/8] 0, 128
    %219 = vxpose.xlu0.c.b16.cont [6/8] 0, 128
    %220 = vxpose.xlu0.c.b16.cont [7/8] 0, 128
    %221 = vxpose.xlu0.c.b16.end [8/8] 0, 128
    %v222 = vpop.trf.xlu0
    %v223 = vpop.trf.xlu0
    %v224 = vpop.trf.xlu0
    %v225 = vpop.trf.xlu0
    %v226 = vpop.trf.xlu0
    %v227 = vpop.trf.xlu0
    %v228 = vpop.trf.xlu0
    %v229 = vpop.trf.xlu0
    %vm230 = vcmask 64512
    %v232 = vsel %vm230, %v222, 0
    %vm234 = vcmask 1043456
    %v236 = vsel %vm234, %v212, 0
    %238 = vmatpush.bf16.msra.mxu0 0
    %239 = vmatpush.bf16.msra.mxu0 0
    %240 = vmatpush.bf16.msra.mxu0 0
    %241 = vmatpush.bf16.msra.mxu0 0
    %242 = vmatpush.bf16.msra.mxu0 0
    %243 = vmatpush.bf16.msra.mxu0 0
    %244 = vmatpush.bf16.msra.mxu0 0
    %245 = vmatpush.bf16.msra.mxu0 %v236
    %246 = vmatmul.bf16.gmra.mxu0 %v232
    %v247 = vpop.f32.mrf.mxu0
    %v248 = vadd.f32 0.0, %v247
    %v249 = vpop.f32.mrf.mxu0
    %250 = vdwg.mxu0
    %251 = vxpose.xlu0.c.b16.start [1/8] %v211, 128
    %252 = vxpose.xlu0.c.b16.cont [2/8] 0, 128
    %253 = vxpose.xlu0.c.b16.cont [3/8] 0, 128
    %254 = vxpose.xlu0.c.b16.cont [4/8] 0, 128
    %255 = vxpose.xlu0.c.b16.cont [5/8] 0, 128
    %256 = vxpose.xlu0.c.b16.cont [6/8] 0, 128
    %257 = vxpose.xlu0.c.b16.cont [7/8] 0, 128
    %258 = vxpose.xlu0.c.b16.end [8/8] 0, 128
    %v259 = vpop.trf.xlu0
    %v260 = vpop.trf.xlu0
    %v261 = vpop.trf.xlu0
    %v262 = vpop.trf.xlu0
    %v263 = vpop.trf.xlu0
    %v264 = vpop.trf.xlu0
    %v265 = vpop.trf.xlu0
    %v266 = vpop.trf.xlu0
    %v268 = vsel %vm230, %v259, 0
    %v271 = vsel %vm234, %v213, 0
    %273 = vmatpush.bf16.msra.mxu0 0
    %274 = vmatpush.bf16.msra.mxu0 0
    %275 = vmatpush.bf16.msra.mxu0 0
    %276 = vmatpush.bf16.msra.mxu0 0
    %277 = vmatpush.bf16.msra.mxu0 0
    %278 = vmatpush.bf16.msra.mxu0 0
    %279 = vmatpush.bf16.msra.mxu0 0
    %280 = vmatpush.bf16.msra.mxu0 %v271
    %281 = vmatmul.bf16.gmra.mxu0 %v268
    %v282 = vpop.f32.mrf.mxu0
    %v283 = vadd.f32 0.0, %v282
    %v284 = vpop.f32.mrf.mxu0
    %285 = vdwg.mxu0
    %vm286 = vcmask 257024
    %287 = vst.msk [vmem:[#allocation5] sm:$0xf] %vm286, %v212
    %288 = vst.msk [vmem:[#allocation5 + $0x4] sm:$0xf] %vm286, %v213
    %v289 = vpack.c.bf16 %v248, %v248
    %v290 = vpack.c.bf16 %v283, %v283
    %vm291 = vcmask 254976
    %292 = vst.msk [vmem:[#allocation6] sm:$0x3] %vm291, %v289
    %293 = vst.msk [vmem:[#allocation6 + $0x2] sm:$0x3] %vm291, %v290
    // Predicated region
    $region22: #{tpu_custom_call.1} parent=1 // pred_check
      _
    $region23: #{tpu_custom_call.1} parent=1 // pred_check_branch
      %295 = sbr.rel (0) target = $region25
    $region24: #{tpu_custom_call.1} parent=1 // pred_region
      %297 = vsyncadd [#allocation4], 0
      %s298 = sshll.u32 [#allocation5], 4
      %s299 = int_to_ptr.vmem [resolvable:$true] %s298
      %s300 = sshll.u32 %s4, 4
      %s301 = int_to_ptr.hbm [resolvable:$true] %s300
      %306 = dma.vmem_to_hbm [thread:$0]  %s299, 128, %s301, [#allocation4], 64, 64, 4
    $region25: #{tpu_custom_call.1} parent=1 // pred_fallthru
      _
    // Predicated region
    $region26: #{tpu_custom_call.1} parent=1 // pred_check
      _
    $region27: #{tpu_custom_call.1} parent=1 // pred_check_branch
      %308 = sbr.rel (0) target = $region29
    $region28: #{tpu_custom_call.1} parent=1 // pred_region
      %310 = vsyncadd [#allocation7], 0
      %s311 = sshll.u32 [#allocation6], 4
      %s312 = int_to_ptr.vmem [resolvable:$true] %s311
      %s313 = sshll.u32 %s5, 4
      %s314 = int_to_ptr.hbm [resolvable:$true] %s313
      %319 = dma.vmem_to_hbm [thread:$0]  %s312, 64, %s314, [#allocation7], 32, 32, 2
    $region29: #{tpu_custom_call.1} parent=1 // pred_fallthru
      _
    // Predicated region
    $region30: #{tpu_custom_call.1} parent=1 // pred_check
      _
    $region31: #{tpu_custom_call.1} parent=1 // pred_check_branch
      %321 = sbr.rel (0) target = $region33
    $region32: #{tpu_custom_call.1} parent=1 // pred_region
      %323 = dma.done [#allocation4], 128
    $region33: #{tpu_custom_call.1} parent=1 // pred_fallthru
      _
    // Predicated region
    $region34: #{tpu_custom_call.1} parent=1 // pred_check
      _
    $region35: #{tpu_custom_call.1} parent=1 // pred_check_branch
      %325 = sbr.rel (0) target = $region37
    $region36: #{tpu_custom_call.1} parent=1 // pred_region
      %327 = dma.done [#allocation7], 64
    $region37: #{tpu_custom_call.1} parent=1 // pred_fallthru
      _
    %328 = vsyncpa [#allocation3], 1
    %329 = vsyncpa [#allocation4], 1
    %330 = vsyncpa [#allocation7], 1

</llo_original>
